<compile_context>
chip_gen: v7x
topology: tpu7x:2x2x1
jax: 0.10.0
libtpu: 0.0.40
codegen_flags: <defaults>
</compile_context>

<pallas_src>
import functools
import math

import jax
import jax.numpy as jnp
from jax.experimental import pallas as pl
from jax.experimental.pallas import tpu as pltpu


# --------------------------------------------------------------------------- #
# Fast bounded-range sine (pure VPU: Cody-Waite reduction by pi/2 + short polys)
# --------------------------------------------------------------------------- #
_INV_PIO2 = 0.6366197723675814        # 2/pi
_PIO2_HI = 1.5707855224609375         # pi/2 high part (low mantissa bits zero)
_PIO2_LO = 1.0804333959591557e-05     # pi/2 - _PIO2_HI


def _bounded_sin(z):
    """sin(z) for moderately bounded |z| (SIREN pre-activations, |z| <~ 1e3).

    Generic jnp.sin lowers to a large-range libm-style VPU sequence; at ~6 HBM
    bytes per output element that makes the 4-VALU slot the binding resource
    on v6e/v7x.  A 2-term Cody-Waite reduction + degree-7/6 Taylor polynomials
    gives ~1e-6 absolute error on the bounded range at roughly half the ops.
    """
    n = jnp.floor(z * _INV_PIO2 + 0.5)            # nearest multiple of pi/2
    q = n.astype(jnp.int32)                       # quadrant index
    r = (z - n * _PIO2_HI) - n * _PIO2_LO         # |r| <= pi/4 (+eps)
    r2 = r * r
    sin_r = r + r * r2 * (-1.0 / 6.0 + r2 * (1.0 / 120.0 + r2 * (-1.0 / 5040.0)))
    cos_r = 1.0 + r2 * (-0.5 + r2 * (1.0 / 24.0 + r2 * (-1.0 / 720.0)))
    res = jnp.where((q & 1) == 1, cos_r, sin_r)
    return jnp.where((q & 2) == 2, -res, res)


# --------------------------------------------------------------------------- #
# Kernel
# --------------------------------------------------------------------------- #
def sine_kernel(x_ref, w_ref, b_ref, o_ref, *, fast_sin=True):
    # x_ref : (tm, kin)   f32   activation row tile (bf16 cast done in-kernel)
    # w_ref : (kin, kout) bf16  full prepared weight (constant across the grid)
    # b_ref : (1, kout)   f32   prepared bias (omega_0 folded in)
    # o_ref : (tm, kout)  bf16  output tile (kout multiple of 128 -> dense vst)
    x = x_ref[...].astype(jnp.bfloat16)                 # VPU cast, no HBM cost
    z = jnp.dot(x, w_ref[...], preferred_element_type=jnp.float32)
    z = z + b_ref[...]                                  # f32 bias broadcast
    s = _bounded_sin(z) if fast_sin else jnp.sin(z)     # f32 epilogue (v5e-safe)
    o_ref[...] = s.astype(o_ref.dtype)                  # cast on store (bf16 out)


# --------------------------------------------------------------------------- #
# Hardware queries (safe fallbacks if unavailable)
# --------------------------------------------------------------------------- #
def _num_tensorcores():
    try:
        info = pltpu.get_tpu_info()
        for attr in ("num_cores", "core_count", "num_tensorcores"):
            v = getattr(info, attr, None)
            if isinstance(v, int) and v > 0:
                return v
    except Exception:
        pass
    try:
        v = getattr(jax.devices()[0], "num_cores", None)
        if isinstance(v, int) and v > 0:
            return v
    except Exception:
        pass
    return 1


def _vmem_capacity_bytes():
    try:
        info = pltpu.get_tpu_info()
        for attr in ("vmem_capacity_bytes", "vmem_size_bytes", "vmem_bytes"):
            v = getattr(info, attr, None)
            if isinstance(v, int) and v > 0:
                return v
    except Exception:
        pass
    return 64 * 1024 * 1024   # conservative default (v7x physical VMEM)


# --------------------------------------------------------------------------- #
# Parameter prep / helpers
# --------------------------------------------------------------------------- #
def _round_up(x, m):
    return ((x + m - 1) // m) * m


def init_sine_params(key, in_features, out_features, is_first=False, omega_0=30.0):
    """SIREN init matching the PyTorch module (weight re-init, default bias)."""
    wkey, bkey = jax.random.split(key)
    if is_first:
        bound_w = 1.0 / in_features
    else:
        bound_w = math.sqrt(6.0 / in_features) / omega_0
    # torch nn.Linear layout: weight [out, in]
    w = jax.random.uniform(wkey, (out_features, in_features), jnp.float32,
                           minval=-bound_w, maxval=bound_w)
    bound_b = 1.0 / math.sqrt(in_features)
    b = jax.random.uniform(bkey, (out_features,), jnp.float32,
                           minval=-bound_b, maxval=bound_b)
    return w, b


def prepare_sine_params(w, b, omega_0):
    """One-time parameter transform for the kernel.

    * Folds omega_0 into W and b:  sin(omega*(xW+b)) == sin(x*(omega W)+omega b)
    * Stores W transposed [in, out] in bf16 (halves weight DMA, native MXU).
    * Bias stays f32 (epilogue is f32).
    * Makes the kernel output lane-dense: replicate block-diagonally (fold,
      capped at 4 since the fold grows weight bytes / MXU work by fold^2), and
      zero-pad columns up to the next multiple of 128 for any remaining widths.

    Returns (w_bf16 [kin,kout], b_f32 [1,kout], fold, valid_out=fold*out_f).
    """
    out_f, in_f = w.shape
    w_t = (omega_0 * w.T).astype(jnp.float32)                  # [in, out]
    b_s = (omega_0 * b).reshape(1, out_f).astype(jnp.float32)

    if out_f % 128 == 0:
        fold = 1
    elif 128 % out_f == 0:
        fold = min(128 // out_f, 4)
    else:
        fold = 1

    if fold > 1:
        wide = jnp.zeros((fold * in_f, fold * out_f), jnp.float32)
        for j in range(fold):
            wide = wide.at[j * in_f:(j + 1) * in_f,
                           j * out_f:(j + 1) * out_f].set(w_t)
        w_t = wide
        b_s = jnp.tile(b_s, (1, fold))

    valid_out = fold * out_f
    kout = _round_up(valid_out, 128)
    if kout != valid_out:                 # pad with zero columns -> dense vst
        w_t = jnp.pad(w_t, ((0, 0), (0, kout - valid_out)))
        b_s = jnp.pad(b_s, ((0, 0), (0, kout - valid_out)))

    return w_t.astype(jnp.bfloat16), b_s, fold, valid_out


def _choose_tm(n_rows, num_cores, cap=4096):
    """Row tile: as large as possible (amortize the ~0.35 us/step pipeline
    overhead -- critical on v7x HBM), multiple of 16 (bf16 (16,128) sublane
    packing of the output tile), and split into >=2 grid steps only on
    multi-TensorCore parts so both v7x cores get work on the parallel axis."""
    tm = min(cap, n_rows)
    if num_cores > 1 and tm == n_rows and n_rows >= 32:
        tm = (n_rows + 1) // 2
    return max(_round_up(tm, 16), 16)


# --------------------------------------------------------------------------- #
# Forward wrapper
# --------------------------------------------------------------------------- #
def sine_forward(x, w_prep, b_prep, fold, valid_out, *,
                 out_dtype=jnp.bfloat16, tm_cap=4096, fast_sin=True):
    """x: [N, in_features] f32; (w_prep, b_prep, fold, valid_out) from
    prepare_sine_params.  Returns [N, out_features] in out_dtype."""
    N, in_f = x.shape
    kin, kout = w_prep.shape
    assert kin == fold * in_f, "prepared weight does not match input width"
    out_f = valid_out // fold

    # Row fold needs N % fold == 0 and n_rows a multiple of 16; pad rows with
    # zeros only when needed (no-op for aligned N), slice the output back.
    n_pad = _round_up(N, fold * 16)
    if n_pad != N:
        x = jnp.pad(x, ((0, n_pad - N), (0, 0)))
    n_rows = n_pad // fold
    x2 = x.reshape(n_rows, kin)           # free row-major view; stays f32

    tm = _choose_tm(n_rows, _num_tensorcores(), cap=tm_cap)
    grid = (pl.cdiv(n_rows, tm),)
    # NOTE: the last row-tile may be partial; Pallas clips the block store to
    # valid rows and the out-of-range rows only feed (discarded) epilogue math.
    # Do not remove this comment if refactoring to manual DMA.

    # Constant weight/bias blocks: single-buffer them when the weight is big
    # (v7x VMEM), otherwise keep the default (maximally portable lowering).
    w_bytes = kin * kout * 2
    if w_bytes >= (2 << 20):
        w_spec = pl.BlockSpec((kin, kout), lambda i: (0, 0),
                              pipeline_mode=pl.Buffered(1))
        b_spec = pl.BlockSpec((1, kout), lambda i: (0, 0),
                              pipeline_mode=pl.Buffered(1))
        w_bufs = 1
    else:
        w_spec = pl.BlockSpec((kin, kout), lambda i: (0, 0))
        b_spec = pl.BlockSpec((1, kout), lambda i: (0, 0))
        w_bufs = 2

    out_esz = jnp.dtype(out_dtype).itemsize
    tile_bytes = 2 * tm * (kin * 4 + kout * out_esz)        # dbl-buffered x+out
    const_bytes = w_bufs * (kin * kout * 2 + kout * 4)
    vmem_limit = int(min(max(2 * (tile_bytes + const_bytes), 8 << 20),
                         int(0.75 * _vmem_capacity_bytes())))

    cost = pl.CostEstimate(
        flops=2 * n_rows * kin * kout,
        transcendentals=n_rows * kout,
        bytes_accessed=(n_rows * kin * 4            # x (f32)
                        + kin * kout * 2            # W (bf16)
                        + kout * 4                  # b (f32)
                        + n_rows * kout * out_esz), # out (bf16)
    )

    out2 = pl.pallas_call(
        functools.partial(sine_kernel, fast_sin=fast_sin),
        out_shape=jax.ShapeDtypeStruct((n_rows, kout), out_dtype),
        grid_spec=pltpu.PrefetchScalarGridSpec(
            num_scalar_prefetch=0,
            grid=grid,
            in_specs=[
                pl.BlockSpec((tm, kin), lambda i: (i, 0)),   # activation tile
                w_spec,                                      # full weight
                b_spec,                                      # bias
            ],
            out_specs=pl.BlockSpec((tm, kout), lambda i: (i, 0)),
        ),
        compiler_params=pltpu.CompilerParams(
            dimension_semantics=("parallel",),
            vmem_limit_bytes=vmem_limit,
        ),
        cost_estimate=cost,
    )(x2, w_prep, b_prep)

    # Undo column zero-padding (only if any) and the row fold, drop padded rows.
    if valid_out != kout:
        out2 = out2[:, :valid_out]
    y = out2.reshape(n_rows * fold, out_f)
    if n_pad != N:
        y = y[:N]
    return y


# --------------------------------------------------------------------------- #
# Demo / correctness check
# --------------------------------------------------------------------------- #
if __name__ == "__main__":
    key = jax.random.PRNGKey(0)
    kx, kp = jax.random.split(key)

    N, in_features, out_features = 256, 32, 64
    omega_0 = 30.0

    x = jax.random.uniform(kx, (N, in_features), jnp.float32,
                           minval=-1.0, maxval=1.0)
    w, b = init_sine_params(kp, in_features, out_features,
                            is_first=True, omega_0=omega_0)
    w_k, b_k, fold, valid_out = prepare_sine_params(w, b, omega_0)

    y = sine_forward(x, w_k, b_k, fold, valid_out)
    y = jax.block_until_ready(y)
    assert y.shape == (N, out_features)
    assert y.dtype == jnp.bfloat16
    yf = y.astype(jnp.float32)

    # Tight check: same bf16-quantized inputs/weights, plain XLA math.
    # Slack covers the bf16 output cast (<= ~2e-3) and the bounded-range sin
    # polynomial (<= ~4e-6), i.e. it verifies the kernel itself.
    xq = x.astype(jnp.bfloat16).astype(jnp.float32)
    wq = (omega_0 * w.T).astype(jnp.bfloat16).astype(jnp.float32)
    y_ref_q = jnp.sin(xq @ wq + omega_0 * b[None, :])
    assert jnp.allclose(yf, y_ref_q, atol=1.5e-2), \
        float(jnp.max(jnp.abs(yf - y_ref_q)))

    # Loose check against the exact f32 reference (matches the PyTorch module);
    # tolerance accounts for bf16 MXU inputs and the bf16 output.
    y_ref = jnp.sin(omega_0 * (x @ w.T + b[None, :]))
    assert jnp.allclose(yf, y_ref, atol=7.5e-2), \
        float(jnp.max(jnp.abs(yf - y_ref)))

    # Exercise the ragged-N path (row padding + output slice), N not aligned.
    N2 = 100
    x2 = jax.random.uniform(jax.random.PRNGKey(1), (N2, in_features),
                            jnp.float32, minval=-1.0, maxval=1.0)
    y2 = jax.block_until_ready(sine_forward(x2, w_k, b_k, fold, valid_out))
    y2_ref = jnp.sin(omega_0 * (x2 @ w.T + b[None, :]))
    assert y2.shape == (N2, out_features)
    assert jnp.allclose(y2.astype(jnp.float32), y2_ref, atol=7.5e-2)

    print("KERNEL_OK")
</pallas_src>

<mosaic_0001>
module attributes {stable_mosaic.version = 11 : i64} {
  func.func @sine_kernel(%arg0: i32, %arg1: memref<128x64xf32, #tpu.memory_space<vmem>>, %arg2: memref<64x128xbf16, #tpu.memory_space<vmem>>, %arg3: memref<1x128xf32, #tpu.memory_space<vmem>>, %arg4: memref<128x128xbf16, #tpu.memory_space<vmem>>) attributes {dimension_semantics = [#tpu.dimension_semantics<parallel>], iteration_bounds = array<i64: 1>, scalar_prefetch = 0 : i64, scratch_operands = 0 : i64, tpu.core_type = #tpu.core_type<tc>, window_params = [{transform_indices = @transform_0, window_bounds = array<i64: 128, 64>}, {pipeline_mode = #tpu.pipeline_mode<synchronous>, transform_indices = @transform_1, window_bounds = array<i64: 64, 128>}, {pipeline_mode = #tpu.pipeline_mode<synchronous>, transform_indices = @transform_2, window_bounds = array<i64: 1, 128>}, {transform_indices = @transform_3, window_bounds = array<i64: 128, 128>}]} {
    %c0 = arith.constant 0 : index
    %c0_0 = arith.constant 0 : index
    %0 = vector.load %arg1[%c0, %c0_0] : memref<128x64xf32, #tpu.memory_space<vmem>>, vector<128x64xf32>
    %1 = arith.truncf %0 : vector<128x64xf32> to vector<128x64xbf16>
    %c0_1 = arith.constant 0 : index
    %c0_2 = arith.constant 0 : index
    %2 = vector.load %arg2[%c0_1, %c0_2] : memref<64x128xbf16, #tpu.memory_space<vmem>>, vector<64x128xbf16>
    %cst = arith.constant dense<0.000000e+00> : vector<128x128xf32>
    %3 = tpu.matmul %1, %2, %cst {dimension_numbers = #tpu.dot_dimension_numbers<[1], [0], [0], [1], [0, 0, 1, 1], [], []>} : vector<128x64xbf16>, vector<64x128xbf16>, vector<128x128xf32> -> vector<128x128xf32>
    %c0_3 = arith.constant 0 : index
    %c0_4 = arith.constant 0 : index
    %4 = vector.load %arg3[%c0_3, %c0_4] : memref<1x128xf32, #tpu.memory_space<vmem>>, vector<1x128xf32>
    %5 = vector.broadcast %4 : vector<1x128xf32> to vector<128x128xf32>
    %6 = arith.addf %3, %5 : vector<128x128xf32>
    %cst_5 = arith.constant 0.636619746 : f32
    %7 = vector.broadcast %cst_5 : f32 to vector<128x128xf32>
    %8 = arith.mulf %6, %7 : vector<128x128xf32>
    %cst_6 = arith.constant 5.000000e-01 : f32
    %9 = vector.broadcast %cst_6 : f32 to vector<128x128xf32>
    %10 = arith.addf %8, %9 : vector<128x128xf32>
    %11 = math.floor %10 : vector<128x128xf32>
    %12 = arith.fptosi %11 : vector<128x128xf32> to vector<128x128xi32>
    %cst_7 = arith.constant 1.57078552 : f32
    %13 = vector.broadcast %cst_7 : f32 to vector<128x128xf32>
    %14 = arith.mulf %11, %13 : vector<128x128xf32>
    %15 = arith.subf %6, %14 : vector<128x128xf32>
    %cst_8 = arith.constant 1.08043341E-5 : f32
    %16 = vector.broadcast %cst_8 : f32 to vector<128x128xf32>
    %17 = arith.mulf %11, %16 : vector<128x128xf32>
    %18 = arith.subf %15, %17 : vector<128x128xf32>
    %19 = arith.mulf %18, %18 : vector<128x128xf32>
    %20 = arith.mulf %18, %19 : vector<128x128xf32>
    %cst_9 = arith.constant -1.98412701E-4 : f32
    %21 = vector.broadcast %cst_9 : f32 to vector<128x128xf32>
    %22 = arith.mulf %19, %21 : vector<128x128xf32>
    %cst_10 = arith.constant 0.00833333377 : f32
    %23 = vector.broadcast %cst_10 : f32 to vector<128x128xf32>
    %24 = arith.addf %23, %22 : vector<128x128xf32>
    %25 = arith.mulf %19, %24 : vector<128x128xf32>
    %cst_11 = arith.constant -0.166666672 : f32
    %26 = vector.broadcast %cst_11 : f32 to vector<128x128xf32>
    %27 = arith.addf %26, %25 : vector<128x128xf32>
    %28 = arith.mulf %20, %27 : vector<128x128xf32>
    %29 = arith.addf %18, %28 : vector<128x128xf32>
    %cst_12 = arith.constant -0.00138888892 : f32
    %30 = vector.broadcast %cst_12 : f32 to vector<128x128xf32>
    %31 = arith.mulf %19, %30 : vector<128x128xf32>
    %cst_13 = arith.constant 0.0416666679 : f32
    %32 = vector.broadcast %cst_13 : f32 to vector<128x128xf32>
    %33 = arith.addf %32, %31 : vector<128x128xf32>
    %34 = arith.mulf %19, %33 : vector<128x128xf32>
    %cst_14 = arith.constant -5.000000e-01 : f32
    %35 = vector.broadcast %cst_14 : f32 to vector<128x128xf32>
    %36 = arith.addf %35, %34 : vector<128x128xf32>
    %37 = arith.mulf %19, %36 : vector<128x128xf32>
    %cst_15 = arith.constant 1.000000e+00 : f32
    %38 = vector.broadcast %cst_15 : f32 to vector<128x128xf32>
    %39 = arith.addf %38, %37 : vector<128x128xf32>
    %c1_i32 = arith.constant 1 : i32
    %40 = vector.broadcast %c1_i32 : i32 to vector<128x128xi32>
    %41 = arith.andi %12, %40 : vector<128x128xi32>
    %c1_i32_16 = arith.constant 1 : i32
    %42 = vector.broadcast %c1_i32_16 : i32 to vector<128x128xi32>
    %43 = arith.cmpi eq, %41, %42 : vector<128x128xi32>
    %44 = arith.select %43, %39, %29 : vector<128x128xi1>, vector<128x128xf32>
    %c2_i32 = arith.constant 2 : i32
    %45 = vector.broadcast %c2_i32 : i32 to vector<128x128xi32>
    %46 = arith.andi %12, %45 : vector<128x128xi32>
    %c2_i32_17 = arith.constant 2 : i32
    %47 = vector.broadcast %c2_i32_17 : i32 to vector<128x128xi32>
    %48 = arith.cmpi eq, %46, %47 : vector<128x128xi32>
    %cst_18 = arith.constant 0.000000e+00 : f32
    %49 = vector.broadcast %cst_18 : f32 to vector<128x128xf32>
    %50 = arith.subf %49, %44 : vector<128x128xf32>
    %51 = arith.select %48, %50, %44 : vector<128x128xi1>, vector<128x128xf32>
    %52 = arith.truncf %51 : vector<128x128xf32> to vector<128x128xbf16>
    %c0_19 = arith.constant 0 : index
    %c0_20 = arith.constant 0 : index
    %53 = vector.load %arg4[%c0_19, %c0_20] : memref<128x128xbf16, #tpu.memory_space<vmem>>, vector<128x128xbf16>
    tpu.vector_store %arg4[%c0_19, %c0_20], %52 {strides = array<i32>} : memref<128x128xbf16, #tpu.memory_space<vmem>>, vector<128x128xbf16>,
    return
  }
  func.func @transform_0(%arg0: i32) -> (i32, i32) {
    %c0_i32 = arith.constant 0 : i32
    %c0_i32_0 = arith.constant 0 : i32
    return %arg0, %c0_i32 : i32, i32
  }
  func.func @transform_1(%arg0: i32) -> (i32, i32) {
    %c0_i32 = arith.constant 0 : i32
    %c0_i32_0 = arith.constant 0 : i32
    %c0_i32_1 = arith.constant 0 : i32
    return %c0_i32, %c0_i32_0 : i32, i32
  }
  func.func @transform_2(%arg0: i32) -> (i32, i32) {
    %c0_i32 = arith.constant 0 : i32
    %c0_i32_0 = arith.constant 0 : i32
    %c0_i32_1 = arith.constant 0 : i32
    return %c0_i32, %c0_i32_0 : i32, i32
  }
  func.func @transform_3(%arg0: i32) -> (i32, i32) {
    %c0_i32 = arith.constant 0 : i32
    %c0_i32_0 = arith.constant 0 : i32
    return %arg0, %c0_i32 : i32, i32
  }
}

</mosaic_0001>

<llo_original>
// kernel: tpu_custom_call.1
$region0: #{tpu_custom_call.1}
  #allocation0 [shape = 'u32[]', space=smem, size = 0x4, offset = 0x4, fixed_abs, tag = 'smem constant byte address 0x4 - core index']
  #allocation1 [shape = 'u32[144,128]{1,0:T(1,128)}', space=vmem, size = 0x12000, scoped, tag = 'internal scratch']
  %s0 = inlined_call_operand.vmem [shape: f32[128,64], index: 0, kind: input, shape index: {}]
  %s1 = inlined_call_operand.vmem [shape: bf16[64,128], index: 1, kind: input, shape index: {}]
  %s2 = inlined_call_operand.vmem [shape: f32[1,128], index: 2, kind: input, shape index: {}]
  %s3 = inlined_call_operand.hbm [shape: bf16[128,128], index: 3, kind: output, shape index: {}]
  %s4 = sld [smem:[#allocation0]]
  $region22: #{tpu_custom_call.1} parent=0
    _
  %s6 = ssub.s32 1, %s4
  %s7 = scalar_select 0, %s6, %s4
  $region1: #{tpu_custom_call.1} parent=0
    #allocation2 [shape = 'u8[32768]{0}', space=vmem, size = 0x8000, scoped, tag = 'output window, operand 0, single buffered']
    #allocation3 [shape = 's32[1]{0}', space=sflag, size = 0x4, scoped, tag = 'scoped memory for tpu_custom_call.1']
    %8 = vsyncpa [#allocation3], 0
    // Predicated region
    $region2: #{tpu_custom_call.1} parent=1 // pred_check
      _
    $region3: #{tpu_custom_call.1} parent=1 // pred_check_branch
      %10 = sbr.rel (0) target = $region5
    $region4: #{tpu_custom_call.1} parent=1 // pred_region
      _
    $region5: #{tpu_custom_call.1} parent=1 // pred_fallthru
      _
    // Predicated region
    $region6: #{tpu_custom_call.1} parent=1 // pred_check
      _
    $region7: #{tpu_custom_call.1} parent=1 // pred_check_branch
      %12 = sbr.rel (0) target = $region9
    $region8: #{tpu_custom_call.1} parent=1 // pred_region
      _
    $region9: #{tpu_custom_call.1} parent=1 // pred_fallthru
      _
    // Predicated region
    $region10: #{tpu_custom_call.1} parent=1 // pred_check
      _
    $region11: #{tpu_custom_call.1} parent=1 // pred_check_branch
      %14 = sbr.rel (0) target = $region13
    $region12: #{tpu_custom_call.1} parent=1 // pred_region
      _
    $region13: #{tpu_custom_call.1} parent=1 // pred_fallthru
      _
    %v16 = vld [vmem:[%s0] sm:$0xff]
    %v17 = vld [vmem:[%s0 + $0x8] sm:$0xff]
    %v18 = vld [vmem:[%s0 + $0x10] sm:$0xff]
    %v19 = vld [vmem:[%s0 + $0x18] sm:$0xff]
    %v20 = vld [vmem:[%s0 + $0x20] sm:$0xff]
    %v21 = vld [vmem:[%s0 + $0x28] sm:$0xff]
    %v22 = vld [vmem:[%s0 + $0x30] sm:$0xff]
    %v23 = vld [vmem:[%s0 + $0x38] sm:$0xff]
    %v24 = vld [vmem:[%s0 + $0x40] sm:$0xff]
    %v25 = vld [vmem:[%s0 + $0x48] sm:$0xff]
    %v26 = vld [vmem:[%s0 + $0x50] sm:$0xff]
    %v27 = vld [vmem:[%s0 + $0x58] sm:$0xff]
    %v28 = vld [vmem:[%s0 + $0x60] sm:$0xff]
    %v29 = vld [vmem:[%s0 + $0x68] sm:$0xff]
    %v30 = vld [vmem:[%s0 + $0x70] sm:$0xff]
    %v31 = vld [vmem:[%s0 + $0x78] sm:$0xff]
    %v32 = vpack.c.bf16 %v17, %v16
    %v33 = vpack.c.bf16 %v19, %v18
    %v34 = vpack.c.bf16 %v21, %v20
    %v35 = vpack.c.bf16 %v23, %v22
    %v36 = vpack.c.bf16 %v25, %v24
    %v37 = vpack.c.bf16 %v27, %v26
    %v38 = vpack.c.bf16 %v29, %v28
    %v39 = vpack.c.bf16 %v31, %v30
    %v40 = vld [vmem:[%s1] sm:$0xf]
    %v41 = vld [vmem:[%s1 + $0x4] sm:$0xf]
    %v42 = vld [vmem:[%s1 + $0x8] sm:$0xf]
    %v43 = vld [vmem:[%s1 + $0xc] sm:$0xf]
    %v44 = vld [vmem:[%s1 + $0x10] sm:$0xf]
    %v45 = vld [vmem:[%s1 + $0x14] sm:$0xf]
    %v46 = vld [vmem:[%s1 + $0x18] sm:$0xf]
    %v47 = vld [vmem:[%s1 + $0x1c] sm:$0xf]
    %v48 = vld [vmem:[%s2] sm:$0x1]
    %v50 = vlaneseq
    %v51 = vshrl.u32 %v50, 7
    %v52 = vsub.s32 0, %v51
    %v53 = vrot.slane %v48, %v52
    %v63 = vunpack.c.l.b16 %v40
    %v64 = vunpack.c.l.b16 %v41
    %v65 = vunpack.c.l.b16 %v42
    %v66 = vunpack.c.l.b16 %v43
    %v67 = vunpack.c.l.b16 %v44
    %v68 = vunpack.c.l.b16 %v45
    %v69 = vunpack.c.l.b16 %v46
    %v70 = vunpack.c.l.b16 %v47
    %v71 = vpack.c.b16 %v64, %v63
    %v72 = vpack.c.b16 %v66, %v65
    %v73 = vpack.c.b16 %v68, %v67
    %v74 = vpack.c.b16 %v70, %v69
    %vm79 = vcmask 523264
    %v81 = vsel %vm79, %v32, 0
    %v84 = vsel %vm79, %v33, 0
    %v87 = vsel %vm79, %v34, 0
    %v90 = vsel %vm79, %v35, 0
    %v93 = vsel %vm79, %v36, 0
    %v96 = vsel %vm79, %v37, 0
    %v99 = vsel %vm79, %v38, 0
    %v102 = vsel %vm79, %v39, 0
    %104 = vmatprep.subr.bf16.mxu0 0
    %105 = vmatpush1.bf16.msra.mxu0 %v71
    %106 = vmatprep.subr.bf16.mxu0 0
    %107 = vmatpush1.bf16.msra.mxu0 %v72
    %108 = vmatprep.subr.bf16.mxu0 0
    %109 = vmatpush1.bf16.msra.mxu0 %v73
    %110 = vmatprep.subr.bf16.mxu0 0
    %111 = vmatpush1.bf16.msra.mxu0 %v74
    %112 = vmatprep.subr.bf16.mxu0 0
    %113 = vmatpush1.bf16.msra.mxu0 0
    %114 = vmatprep.subr.bf16.mxu0 0
    %115 = vmatpush1.bf16.msra.mxu0 0
    %116 = vmatprep.subr.bf16.mxu0 0
    %117 = vmatpush1.bf16.msra.mxu0 0
    %118 = vmatprep.subr.bf16.mxu0 0
    %119 = vmatpush1.bf16.msra.mxu0 0
    %120 = vmatprep.subr.bf16.mxu0 0
    %121 = vmatpush1.bf16.msra.mxu0 0
    %122 = vmatprep.subr.bf16.mxu0 0
    %123 = vmatpush1.bf16.msra.mxu0 0
    %124 = vmatprep.subr.bf16.mxu0 0
    %125 = vmatpush1.bf16.msra.mxu0 0
    %126 = vmatprep.subr.bf16.mxu0 0
    %127 = vmatpush1.bf16.msra.mxu0 0
    %128 = vmatprep.subr.bf16.mxu0 0
    %129 = vmatpush1.bf16.msra.mxu0 0
    %130 = vmatprep.subr.bf16.mxu0 0
    %131 = vmatpush1.bf16.msra.mxu0 0
    %132 = vmatprep.subr.bf16.mxu0 0
    %133 = vmatpush1.bf16.msra.mxu0 0
    %134 = vmatprep.subr.bf16.mxu0 0
    %135 = vmatpush1.bf16.msra.mxu0 0
    %136 = vmatprep.mubr.bf16.mxu0 0
    %137 = vmatmul.mubr.bf16.gmra.mrb[0].mxu0 %v81
    %v138 = vpop.f32.mrb[0].mxu0
    %v139 = vadd.f32 %v53, %v138
    %v140 = vpop.f32.mrb[0].mxu0
    %v141 = vpop.f32.mrb[0].mxu0
    %v142 = vadd.f32 %v53, %v141
    %v143 = vpop.f32.mrb[0].mxu0
    %144 = vmatprep.mubr.bf16.mxu0 0
    %145 = vmatmul.mubr.bf16.gmra.mrb[0].mxu0 %v84
    %v146 = vpop.f32.mrb[0].mxu0
    %v147 = vadd.f32 %v53, %v146
    %v148 = vpop.f32.mrb[0].mxu0
    %v149 = vpop.f32.mrb[0].mxu0
    %v150 = vadd.f32 %v53, %v149
    %v151 = vpop.f32.mrb[0].mxu0
    %152 = vmatprep.mubr.bf16.mxu0 0
    %153 = vmatmul.mubr.bf16.gmra.mrb[0].mxu0 %v87
    %v154 = vpop.f32.mrb[0].mxu0
    %v155 = vadd.f32 %v53, %v154
    %v156 = vpop.f32.mrb[0].mxu0
    %v157 = vpop.f32.mrb[0].mxu0
    %v158 = vadd.f32 %v53, %v157
    %v159 = vpop.f32.mrb[0].mxu0
    %160 = vmatprep.mubr.bf16.mxu0 0
    %161 = vmatmul.mubr.bf16.gmra.mrb[0].mxu0 %v90
    %v162 = vpop.f32.mrb[0].mxu0
    %v163 = vadd.f32 %v53, %v162
    %v164 = vpop.f32.mrb[0].mxu0
    %v165 = vpop.f32.mrb[0].mxu0
    %v166 = vadd.f32 %v53, %v165
    %v167 = vpop.f32.mrb[0].mxu0
    %168 = vmatprep.mubr.bf16.mxu0 0
    %169 = vmatmul.mubr.bf16.gmra.mrb[0].mxu0 %v93
    %v170 = vpop.f32.mrb[0].mxu0
    %v171 = vadd.f32 %v53, %v170
    %v172 = vpop.f32.mrb[0].mxu0
    %v173 = vpop.f32.mrb[0].mxu0
    %v174 = vadd.f32 %v53, %v173
    %v175 = vpop.f32.mrb[0].mxu0
    %176 = vmatprep.mubr.bf16.mxu0 0
    %177 = vmatmul.mubr.bf16.gmra.mrb[0].mxu0 %v96
    %v178 = vpop.f32.mrb[0].mxu0
    %v179 = vadd.f32 %v53, %v178
    %v180 = vpop.f32.mrb[0].mxu0
    %v181 = vpop.f32.mrb[0].mxu0
    %v182 = vadd.f32 %v53, %v181
    %v183 = vpop.f32.mrb[0].mxu0
    %184 = vmatprep.mubr.bf16.mxu0 0
    %185 = vmatmul.mubr.bf16.gmra.mrb[0].mxu0 %v99
    %v186 = vpop.f32.mrb[0].mxu0
    %v187 = vadd.f32 %v53, %v186
    %v188 = vpop.f32.mrb[0].mxu0
    %v189 = vpop.f32.mrb[0].mxu0
    %v190 = vadd.f32 %v53, %v189
    %v191 = vpop.f32.mrb[0].mxu0
    %192 = vmatprep.mubr.bf16.mxu0 0
    %193 = vmatmul.mubr.bf16.gmra.mrb[0].mxu0 %v102
    %v194 = vpop.f32.mrb[0].mxu0
    %v195 = vadd.f32 %v53, %v194
    %v196 = vpop.f32.mrb[0].mxu0
    %v197 = vpop.f32.mrb[0].mxu0
    %v198 = vadd.f32 %v53, %v197
    %v199 = vpop.f32.mrb[0].mxu0
    %200 = vdwg.mxu0
    %v201 = vmul.f32 %v139, 0.63661975
    %v202 = vmul.f32 %v142, 0.63661975
    %v203 = vmul.f32 %v147, 0.63661975
    %v204 = vmul.f32 %v150, 0.63661975
    %v205 = vmul.f32 %v155, 0.63661975
    %v206 = vmul.f32 %v158, 0.63661975
    %v207 = vmul.f32 %v163, 0.63661975
    %v208 = vmul.f32 %v166, 0.63661975
    %v209 = vmul.f32 %v171, 0.63661975
    %v210 = vmul.f32 %v174, 0.63661975
    %v211 = vmul.f32 %v179, 0.63661975
    %v212 = vmul.f32 %v182, 0.63661975
    %v213 = vmul.f32 %v187, 0.63661975
    %v214 = vmul.f32 %v190, 0.63661975
    %v215 = vmul.f32 %v195, 0.63661975
    %v216 = vmul.f32 %v198, 0.63661975
    %v217 = vadd.f32 %v201, 0.5
    %v218 = vadd.f32 %v202, 0.5
    %v219 = vadd.f32 %v203, 0.5
    %v220 = vadd.f32 %v204, 0.5
    %v221 = vadd.f32 %v205, 0.5
    %v222 = vadd.f32 %v206, 0.5
    %v223 = vadd.f32 %v207, 0.5
    %v224 = vadd.f32 %v208, 0.5
    %v225 = vadd.f32 %v209, 0.5
    %v226 = vadd.f32 %v210, 0.5
    %v227 = vadd.f32 %v211, 0.5
    %v228 = vadd.f32 %v212, 0.5
    %v229 = vadd.f32 %v213, 0.5
    %v230 = vadd.f32 %v214, 0.5
    %v231 = vadd.f32 %v215, 0.5
    %v232 = vadd.f32 %v216, 0.5
    %v233 = vfloor.f32 %v217
    %v234 = vfloor.f32 %v218
    %v235 = vfloor.f32 %v219
    %v236 = vfloor.f32 %v220
    %v237 = vfloor.f32 %v221
    %v238 = vfloor.f32 %v222
    %v239 = vfloor.f32 %v223
    %v240 = vfloor.f32 %v224
    %v241 = vfloor.f32 %v225
    %v242 = vfloor.f32 %v226
    %v243 = vfloor.f32 %v227
    %v244 = vfloor.f32 %v228
    %v245 = vfloor.f32 %v229
    %v246 = vfloor.f32 %v230
    %v247 = vfloor.f32 %v231
    %v248 = vfloor.f32 %v232
    %v249 = vcvt.f32.s32.to.zero.pseudo %v233
    %v250 = vcvt.f32.s32.to.zero.pseudo %v234
    %v251 = vcvt.f32.s32.to.zero.pseudo %v235
    %v252 = vcvt.f32.s32.to.zero.pseudo %v236
    %v253 = vcvt.f32.s32.to.zero.pseudo %v237
    %v254 = vcvt.f32.s32.to.zero.pseudo %v238
    %v255 = vcvt.f32.s32.to.zero.pseudo %v239
    %v256 = vcvt.f32.s32.to.zero.pseudo %v240
    %v257 = vcvt.f32.s32.to.zero.pseudo %v241
    %v258 = vcvt.f32.s32.to.zero.pseudo %v242
    %v259 = vcvt.f32.s32.to.zero.pseudo %v243
    %v260 = vcvt.f32.s32.to.zero.pseudo %v244
    %v261 = vcvt.f32.s32.to.zero.pseudo %v245
    %v262 = vcvt.f32.s32.to.zero.pseudo %v246
    %v263 = vcvt.f32.s32.to.zero.pseudo %v247
    %v264 = vcvt.f32.s32.to.zero.pseudo %v248
    %v265 = vmul.f32 %v233, 1.5707855
    %v266 = vmul.f32 %v234, 1.5707855
    %v267 = vmul.f32 %v235, 1.5707855
    %v268 = vmul.f32 %v236, 1.5707855
    %v269 = vmul.f32 %v237, 1.5707855
    %v270 = vmul.f32 %v238, 1.5707855
    %v271 = vmul.f32 %v239, 1.5707855
    %v272 = vmul.f32 %v240, 1.5707855
    %v273 = vmul.f32 %v241, 1.5707855
    %v274 = vmul.f32 %v242, 1.5707855
    %v275 = vmul.f32 %v243, 1.5707855
    %v276 = vmul.f32 %v244, 1.5707855
    %v277 = vmul.f32 %v245, 1.5707855
    %v278 = vmul.f32 %v246, 1.5707855
    %v279 = vmul.f32 %v247, 1.5707855
    %v280 = vmul.f32 %v248, 1.5707855
    %v281 = vsub.f32 %v139, %v265
    %v282 = vsub.f32 %v142, %v266
    %v283 = vsub.f32 %v147, %v267
    %v284 = vsub.f32 %v150, %v268
    %v285 = vsub.f32 %v155, %v269
    %v286 = vsub.f32 %v158, %v270
    %v287 = vsub.f32 %v163, %v271
    %v288 = vsub.f32 %v166, %v272
    %v289 = vsub.f32 %v171, %v273
    %v290 = vsub.f32 %v174, %v274
    %v291 = vsub.f32 %v179, %v275
    %v292 = vsub.f32 %v182, %v276
    %v293 = vsub.f32 %v187, %v277
    %v294 = vsub.f32 %v190, %v278
    %v295 = vsub.f32 %v195, %v279
    %v296 = vsub.f32 %v198, %v280
    %v297 = vmul.f32 %v233, 1.0804334e-05
    %v298 = vmul.f32 %v234, 1.0804334e-05
    %v299 = vmul.f32 %v235, 1.0804334e-05
    %v300 = vmul.f32 %v236, 1.0804334e-05
    %v301 = vmul.f32 %v237, 1.0804334e-05
    %v302 = vmul.f32 %v238, 1.0804334e-05
    %v303 = vmul.f32 %v239, 1.0804334e-05
    %v304 = vmul.f32 %v240, 1.0804334e-05
    %v305 = vmul.f32 %v241, 1.0804334e-05
    %v306 = vmul.f32 %v242, 1.0804334e-05
    %v307 = vmul.f32 %v243, 1.0804334e-05
    %v308 = vmul.f32 %v244, 1.0804334e-05
    %v309 = vmul.f32 %v245, 1.0804334e-05
    %v310 = vmul.f32 %v246, 1.0804334e-05
    %v311 = vmul.f32 %v247, 1.0804334e-05
    %v312 = vmul.f32 %v248, 1.0804334e-05
    %v313 = vsub.f32 %v281, %v297
    %v314 = vsub.f32 %v282, %v298
    %v315 = vsub.f32 %v283, %v299
    %v316 = vsub.f32 %v284, %v300
    %v317 = vsub.f32 %v285, %v301
    %v318 = vsub.f32 %v286, %v302
    %v319 = vsub.f32 %v287, %v303
    %v320 = vsub.f32 %v288, %v304
    %v321 = vsub.f32 %v289, %v305
    %v322 = vsub.f32 %v290, %v306
    %v323 = vsub.f32 %v291, %v307
    %v324 = vsub.f32 %v292, %v308
    %v325 = vsub.f32 %v293, %v309
    %v326 = vsub.f32 %v294, %v310
    %v327 = vsub.f32 %v295, %v311
    %v328 = vsub.f32 %v296, %v312
    %v329 = vmul.f32 %v313, %v313
    %v330 = vmul.f32 %v314, %v314
    %v331 = vmul.f32 %v315, %v315
    %v332 = vmul.f32 %v316, %v316
    %v333 = vmul.f32 %v317, %v317
    %v334 = vmul.f32 %v318, %v318
    %v335 = vmul.f32 %v319, %v319
    %v336 = vmul.f32 %v320, %v320
    %v337 = vmul.f32 %v321, %v321
    %v338 = vmul.f32 %v322, %v322
    %v339 = vmul.f32 %v323, %v323
    %v340 = vmul.f32 %v324, %v324
    %v341 = vmul.f32 %v325, %v325
    %v342 = vmul.f32 %v326, %v326
    %v343 = vmul.f32 %v327, %v327
    %v344 = vmul.f32 %v328, %v328
    %v345 = vmul.f32 %v313, %v329
    %v346 = vmul.f32 %v314, %v330
    %v347 = vmul.f32 %v315, %v331
    %v348 = vmul.f32 %v316, %v332
    %v349 = vmul.f32 %v317, %v333
    %v350 = vmul.f32 %v318, %v334
    %v351 = vmul.f32 %v319, %v335
    %v352 = vmul.f32 %v320, %v336
    %v353 = vmul.f32 %v321, %v337
    %v354 = vmul.f32 %v322, %v338
    %v355 = vmul.f32 %v323, %v339
    %v356 = vmul.f32 %v324, %v340
    %v357 = vmul.f32 %v325, %v341
    %v358 = vmul.f32 %v326, %v342
    %v359 = vmul.f32 %v327, %v343
    %v360 = vmul.f32 %v328, %v344
    %v361 = vmul.f32 %v329, -0.0001984127
    %v362 = vmul.f32 %v330, -0.0001984127
    %v363 = vmul.f32 %v331, -0.0001984127
    %v364 = vmul.f32 %v332, -0.0001984127
    %v365 = vmul.f32 %v333, -0.0001984127
    %v366 = vmul.f32 %v334, -0.0001984127
    %v367 = vmul.f32 %v335, -0.0001984127
    %v368 = vmul.f32 %v336, -0.0001984127
    %v369 = vmul.f32 %v337, -0.0001984127
    %v370 = vmul.f32 %v338, -0.0001984127
    %v371 = vmul.f32 %v339, -0.0001984127
    %v372 = vmul.f32 %v340, -0.0001984127
    %v373 = vmul.f32 %v341, -0.0001984127
    %v374 = vmul.f32 %v342, -0.0001984127
    %v375 = vmul.f32 %v343, -0.0001984127
    %v376 = vmul.f32 %v344, -0.0001984127
    %v377 = vadd.f32 %v361, 0.008333334
    %v378 = vadd.f32 %v362, 0.008333334
    %v379 = vadd.f32 %v363, 0.008333334
    %v380 = vadd.f32 %v364, 0.008333334
    %v381 = vadd.f32 %v365, 0.008333334
    %v382 = vadd.f32 %v366, 0.008333334
    %v383 = vadd.f32 %v367, 0.008333334
    %v384 = vadd.f32 %v368, 0.008333334
    %v385 = vadd.f32 %v369, 0.008333334
    %v386 = vadd.f32 %v370, 0.008333334
    %v387 = vadd.f32 %v371, 0.008333334
    %v388 = vadd.f32 %v372, 0.008333334
    %v389 = vadd.f32 %v373, 0.008333334
    %v390 = vadd.f32 %v374, 0.008333334
    %v391 = vadd.f32 %v375, 0.008333334
    %v392 = vadd.f32 %v376, 0.008333334
    %v393 = vmul.f32 %v329, %v377
    %v394 = vmul.f32 %v330, %v378
    %v395 = vmul.f32 %v331, %v379
    %v396 = vmul.f32 %v332, %v380
    %v397 = vmul.f32 %v333, %v381
    %v398 = vmul.f32 %v334, %v382
    %v399 = vmul.f32 %v335, %v383
    %v400 = vmul.f32 %v336, %v384
    %v401 = vmul.f32 %v337, %v385
    %v402 = vmul.f32 %v338, %v386
    %v403 = vmul.f32 %v339, %v387
    %v404 = vmul.f32 %v340, %v388
    %v405 = vmul.f32 %v341, %v389
    %v406 = vmul.f32 %v342, %v390
    %v407 = vmul.f32 %v343, %v391
    %v408 = vmul.f32 %v344, %v392
    %v409 = vadd.f32 %v393, -0.16666667
    %v410 = vadd.f32 %v394, -0.16666667
    %v411 = vadd.f32 %v395, -0.16666667
    %v412 = vadd.f32 %v396, -0.16666667
    %v413 = vadd.f32 %v397, -0.16666667
    %v414 = vadd.f32 %v398, -0.16666667
    %v415 = vadd.f32 %v399, -0.16666667
    %v416 = vadd.f32 %v400, -0.16666667
    %v417 = vadd.f32 %v401, -0.16666667
    %v418 = vadd.f32 %v402, -0.16666667
    %v419 = vadd.f32 %v403, -0.16666667
    %v420 = vadd.f32 %v404, -0.16666667
    %v421 = vadd.f32 %v405, -0.16666667
    %v422 = vadd.f32 %v406, -0.16666667
    %v423 = vadd.f32 %v407, -0.16666667
    %v424 = vadd.f32 %v408, -0.16666667
    %v425 = vmul.f32 %v345, %v409
    %v426 = vmul.f32 %v346, %v410
    %v427 = vmul.f32 %v347, %v411
    %v428 = vmul.f32 %v348, %v412
    %v429 = vmul.f32 %v349, %v413
    %v430 = vmul.f32 %v350, %v414
    %v431 = vmul.f32 %v351, %v415
    %v432 = vmul.f32 %v352, %v416
    %v433 = vmul.f32 %v353, %v417
    %v434 = vmul.f32 %v354, %v418
    %v435 = vmul.f32 %v355, %v419
    %v436 = vmul.f32 %v356, %v420
    %v437 = vmul.f32 %v357, %v421
    %v438 = vmul.f32 %v358, %v422
    %v439 = vmul.f32 %v359, %v423
    %v440 = vmul.f32 %v360, %v424
    %v441 = vadd.f32 %v313, %v425
    %v442 = vadd.f32 %v314, %v426
    %v443 = vadd.f32 %v315, %v427
    %v444 = vadd.f32 %v316, %v428
    %v445 = vadd.f32 %v317, %v429
    %v446 = vadd.f32 %v318, %v430
    %v447 = vadd.f32 %v319, %v431
    %v448 = vadd.f32 %v320, %v432
    %v449 = vadd.f32 %v321, %v433
    %v450 = vadd.f32 %v322, %v434
    %v451 = vadd.f32 %v323, %v435
    %v452 = vadd.f32 %v324, %v436
    %v453 = vadd.f32 %v325, %v437
    %v454 = vadd.f32 %v326, %v438
    %v455 = vadd.f32 %v327, %v439
    %v456 = vadd.f32 %v328, %v440
    %v457 = vmul.f32 %v329, -0.0013888889
    %v458 = vmul.f32 %v330, -0.0013888889
    %v459 = vmul.f32 %v331, -0.0013888889
    %v460 = vmul.f32 %v332, -0.0013888889
    %v461 = vmul.f32 %v333, -0.0013888889
    %v462 = vmul.f32 %v334, -0.0013888889
    %v463 = vmul.f32 %v335, -0.0013888889
    %v464 = vmul.f32 %v336, -0.0013888889
    %v465 = vmul.f32 %v337, -0.0013888889
    %v466 = vmul.f32 %v338, -0.0013888889
    %v467 = vmul.f32 %v339, -0.0013888889
    %v468 = vmul.f32 %v340, -0.0013888889
    %v469 = vmul.f32 %v341, -0.0013888889
    %v470 = vmul.f32 %v342, -0.0013888889
    %v471 = vmul.f32 %v343, -0.0013888889
    %v472 = vmul.f32 %v344, -0.0013888889
    %v473 = vadd.f32 %v457, 0.041666668
    %v474 = vadd.f32 %v458, 0.041666668
    %v475 = vadd.f32 %v459, 0.041666668
    %v476 = vadd.f32 %v460, 0.041666668
    %v477 = vadd.f32 %v461, 0.041666668
    %v478 = vadd.f32 %v462, 0.041666668
    %v479 = vadd.f32 %v463, 0.041666668
    %v480 = vadd.f32 %v464, 0.041666668
    %v481 = vadd.f32 %v465, 0.041666668
    %v482 = vadd.f32 %v466, 0.041666668
    %v483 = vadd.f32 %v467, 0.041666668
    %v484 = vadd.f32 %v468, 0.041666668
    %v485 = vadd.f32 %v469, 0.041666668
    %v486 = vadd.f32 %v470, 0.041666668
    %v487 = vadd.f32 %v471, 0.041666668
    %v488 = vadd.f32 %v472, 0.041666668
    %v489 = vmul.f32 %v329, %v473
    %v490 = vmul.f32 %v330, %v474
    %v491 = vmul.f32 %v331, %v475
    %v492 = vmul.f32 %v332, %v476
    %v493 = vmul.f32 %v333, %v477
    %v494 = vmul.f32 %v334, %v478
    %v495 = vmul.f32 %v335, %v479
    %v496 = vmul.f32 %v336, %v480
    %v497 = vmul.f32 %v337, %v481
    %v498 = vmul.f32 %v338, %v482
    %v499 = vmul.f32 %v339, %v483
    %v500 = vmul.f32 %v340, %v484
    %v501 = vmul.f32 %v341, %v485
    %v502 = vmul.f32 %v342, %v486
    %v503 = vmul.f32 %v343, %v487
    %v504 = vmul.f32 %v344, %v488
    %v505 = vadd.f32 %v489, -0.5
    %v506 = vadd.f32 %v490, -0.5
    %v507 = vadd.f32 %v491, -0.5
    %v508 = vadd.f32 %v492, -0.5
    %v509 = vadd.f32 %v493, -0.5
    %v510 = vadd.f32 %v494, -0.5
    %v511 = vadd.f32 %v495, -0.5
    %v512 = vadd.f32 %v496, -0.5
    %v513 = vadd.f32 %v497, -0.5
    %v514 = vadd.f32 %v498, -0.5
    %v515 = vadd.f32 %v499, -0.5
    %v516 = vadd.f32 %v500, -0.5
    %v517 = vadd.f32 %v501, -0.5
    %v518 = vadd.f32 %v502, -0.5
    %v519 = vadd.f32 %v503, -0.5
    %v520 = vadd.f32 %v504, -0.5
    %v521 = vmul.f32 %v329, %v505
    %v522 = vmul.f32 %v330, %v506
    %v523 = vmul.f32 %v331, %v507
    %v524 = vmul.f32 %v332, %v508
    %v525 = vmul.f32 %v333, %v509
    %v526 = vmul.f32 %v334, %v510
    %v527 = vmul.f32 %v335, %v511
    %v528 = vmul.f32 %v336, %v512
    %v529 = vmul.f32 %v337, %v513
    %v530 = vmul.f32 %v338, %v514
    %v531 = vmul.f32 %v339, %v515
    %v532 = vmul.f32 %v340, %v516
    %v533 = vmul.f32 %v341, %v517
    %v534 = vmul.f32 %v342, %v518
    %v535 = vmul.f32 %v343, %v519
    %v536 = vmul.f32 %v344, %v520
    %v537 = vadd.f32 %v521, 1.0
    %v538 = vadd.f32 %v522, 1.0
    %v539 = vadd.f32 %v523, 1.0
    %v540 = vadd.f32 %v524, 1.0
    %v541 = vadd.f32 %v525, 1.0
    %v542 = vadd.f32 %v526, 1.0
    %v543 = vadd.f32 %v527, 1.0
    %v544 = vadd.f32 %v528, 1.0
    %v545 = vadd.f32 %v529, 1.0
    %v546 = vadd.f32 %v530, 1.0
    %v547 = vadd.f32 %v531, 1.0
    %v548 = vadd.f32 %v532, 1.0
    %v549 = vadd.f32 %v533, 1.0
    %v550 = vadd.f32 %v534, 1.0
    %v551 = vadd.f32 %v535, 1.0
    %v552 = vadd.f32 %v536, 1.0
    %v553 = vand.u32 %v249, 1
    %v554 = vand.u32 %v250, 1
    %v555 = vand.u32 %v251, 1
    %v556 = vand.u32 %v252, 1
    %v557 = vand.u32 %v253, 1
    %v558 = vand.u32 %v254, 1
    %v559 = vand.u32 %v255, 1
    %v560 = vand.u32 %v256, 1
    %v561 = vand.u32 %v257, 1
    %v562 = vand.u32 %v258, 1
    %v563 = vand.u32 %v259, 1
    %v564 = vand.u32 %v260, 1
    %v565 = vand.u32 %v261, 1
    %v566 = vand.u32 %v262, 1
    %v567 = vand.u32 %v263, 1
    %v568 = vand.u32 %v264, 1
    %vm569 = vcmp.eq.s32.totalorder %v553, 1
    %vm570 = vcmp.eq.s32.totalorder %v554, 1
    %vm571 = vcmp.eq.s32.totalorder %v555, 1
    %vm572 = vcmp.eq.s32.totalorder %v556, 1
    %vm573 = vcmp.eq.s32.totalorder %v557, 1
    %vm574 = vcmp.eq.s32.totalorder %v558, 1
    %vm575 = vcmp.eq.s32.totalorder %v559, 1
    %vm576 = vcmp.eq.s32.totalorder %v560, 1
    %vm577 = vcmp.eq.s32.totalorder %v561, 1
    %vm578 = vcmp.eq.s32.totalorder %v562, 1
    %vm579 = vcmp.eq.s32.totalorder %v563, 1
    %vm580 = vcmp.eq.s32.totalorder %v564, 1
    %vm581 = vcmp.eq.s32.totalorder %v565, 1
    %vm582 = vcmp.eq.s32.totalorder %v566, 1
    %vm583 = vcmp.eq.s32.totalorder %v567, 1
    %vm584 = vcmp.eq.s32.totalorder %v568, 1
    %v585 = vsel %vm569, %v537, %v441
    %v586 = vsel %vm570, %v538, %v442
    %v587 = vsel %vm571, %v539, %v443
    %v588 = vsel %vm572, %v540, %v444
    %v589 = vsel %vm573, %v541, %v445
    %v590 = vsel %vm574, %v542, %v446
    %v591 = vsel %vm575, %v543, %v447
    %v592 = vsel %vm576, %v544, %v448
    %v593 = vsel %vm577, %v545, %v449
    %v594 = vsel %vm578, %v546, %v450
    %v595 = vsel %vm579, %v547, %v451
    %v596 = vsel %vm580, %v548, %v452
    %v597 = vsel %vm581, %v549, %v453
    %v598 = vsel %vm582, %v550, %v454
    %v599 = vsel %vm583, %v551, %v455
    %v600 = vsel %vm584, %v552, %v456
    %v601 = vand.u32 %v249, 2
    %v602 = vand.u32 %v250, 2
    %v603 = vand.u32 %v251, 2
    %v604 = vand.u32 %v252, 2
    %v605 = vand.u32 %v253, 2
    %v606 = vand.u32 %v254, 2
    %v607 = vand.u32 %v255, 2
    %v608 = vand.u32 %v256, 2
    %v609 = vand.u32 %v257, 2
    %v610 = vand.u32 %v258, 2
    %v611 = vand.u32 %v259, 2
    %v612 = vand.u32 %v260, 2
    %v613 = vand.u32 %v261, 2
    %v614 = vand.u32 %v262, 2
    %v615 = vand.u32 %v263, 2
    %v616 = vand.u32 %v264, 2
    %vm617 = vcmp.eq.s32.totalorder %v601, 2
    %vm618 = vcmp.eq.s32.totalorder %v602, 2
    %vm619 = vcmp.eq.s32.totalorder %v603, 2
    %vm620 = vcmp.eq.s32.totalorder %v604, 2
    %vm621 = vcmp.eq.s32.totalorder %v605, 2
    %vm622 = vcmp.eq.s32.totalorder %v606, 2
    %vm623 = vcmp.eq.s32.totalorder %v607, 2
    %vm624 = vcmp.eq.s32.totalorder %v608, 2
    %vm625 = vcmp.eq.s32.totalorder %v609, 2
    %vm626 = vcmp.eq.s32.totalorder %v610, 2
    %vm627 = vcmp.eq.s32.totalorder %v611, 2
    %vm628 = vcmp.eq.s32.totalorder %v612, 2
    %vm629 = vcmp.eq.s32.totalorder %v613, 2
    %vm630 = vcmp.eq.s32.totalorder %v614, 2
    %vm631 = vcmp.eq.s32.totalorder %v615, 2
    %vm632 = vcmp.eq.s32.totalorder %v616, 2
    %v633 = vsub.f32 0.0, %v585
    %v634 = vsub.f32 0.0, %v586
    %v635 = vsub.f32 0.0, %v587
    %v636 = vsub.f32 0.0, %v588
    %v637 = vsub.f32 0.0, %v589
    %v638 = vsub.f32 0.0, %v590
    %v639 = vsub.f32 0.0, %v591
    %v640 = vsub.f32 0.0, %v592
    %v641 = vsub.f32 0.0, %v593
    %v642 = vsub.f32 0.0, %v594
    %v643 = vsub.f32 0.0, %v595
    %v644 = vsub.f32 0.0, %v596
    %v645 = vsub.f32 0.0, %v597
    %v646 = vsub.f32 0.0, %v598
    %v647 = vsub.f32 0.0, %v599
    %v648 = vsub.f32 0.0, %v600
    %v649 = vsel %vm617, %v633, %v585
    %v650 = vsel %vm618, %v634, %v586
    %v651 = vsel %vm619, %v635, %v587
    %v652 = vsel %vm620, %v636, %v588
    %v653 = vsel %vm621, %v637, %v589
    %v654 = vsel %vm622, %v638, %v590
    %v655 = vsel %vm623, %v639, %v591
    %v656 = vsel %vm624, %v640, %v592
    %v657 = vsel %vm625, %v641, %v593
    %v658 = vsel %vm626, %v642, %v594
    %v659 = vsel %vm627, %v643, %v595
    %v660 = vsel %vm628, %v644, %v596
    %v661 = vsel %vm629, %v645, %v597
    %v662 = vsel %vm630, %v646, %v598
    %v663 = vsel %vm631, %v647, %v599
    %v664 = vsel %vm632, %v648, %v600
    %v665 = vpack.c.bf16 %v650, %v649
    %v666 = vpack.c.bf16 %v652, %v651
    %v667 = vpack.c.bf16 %v654, %v653
    %v668 = vpack.c.bf16 %v656, %v655
    %v669 = vpack.c.bf16 %v658, %v657
    %v670 = vpack.c.bf16 %v660, %v659
    %v671 = vpack.c.bf16 %v662, %v661
    %v672 = vpack.c.bf16 %v664, %v663
    %v681 = vunpack.c.l.b16 %v665
    %v682 = vunpack.c.h.b16 %v665
    %v683 = vunpack.c.l.b16 %v666
    %v684 = vunpack.c.h.b16 %v666
    %v685 = vunpack.c.l.b16 %v667
    %v686 = vunpack.c.h.b16 %v667
    %v687 = vunpack.c.l.b16 %v668
    %v688 = vunpack.c.h.b16 %v668
    %v689 = vunpack.c.l.b16 %v669
    %v690 = vunpack.c.h.b16 %v669
    %v691 = vunpack.c.l.b16 %v670
    %v692 = vunpack.c.h.b16 %v670
    %v693 = vunpack.c.l.b16 %v671
    %v694 = vunpack.c.h.b16 %v671
    %v695 = vunpack.c.l.b16 %v672
    %v696 = vunpack.c.h.b16 %v672
    %v697 = vpack.c.b16 %v681, %v681
    %v698 = vpack.c.b16 %v682, %v682
    %v699 = vpack.c.b16 %v683, %v683
    %v700 = vpack.c.b16 %v684, %v684
    %v701 = vpack.c.b16 %v685, %v685
    %v702 = vpack.c.b16 %v686, %v686
    %v703 = vpack.c.b16 %v687, %v687
    %v704 = vpack.c.b16 %v688, %v688
    %v705 = vpack.c.b16 %v689, %v689
    %v706 = vpack.c.b16 %v690, %v690
    %v707 = vpack.c.b16 %v691, %v691
    %v708 = vpack.c.b16 %v692, %v692
    %v709 = vpack.c.b16 %v693, %v693
    %v710 = vpack.c.b16 %v694, %v694
    %v711 = vpack.c.b16 %v695, %v695
    %v712 = vpack.c.b16 %v696, %v696
    %729 = vst [vmem:[#allocation2] sm:$0xf] %v697
    %730 = vst [vmem:[#allocation2 + $0x4] sm:$0xf] %v698
    %731 = vst [vmem:[#allocation2 + $0x8] sm:$0xf] %v699
    %732 = vst [vmem:[#allocation2 + $0xc] sm:$0xf] %v700
    %733 = vst [vmem:[#allocation2 + $0x10] sm:$0xf] %v701
    %734 = vst [vmem:[#allocation2 + $0x14] sm:$0xf] %v702
    %735 = vst [vmem:[#allocation2 + $0x18] sm:$0xf] %v703
    %736 = vst [vmem:[#allocation2 + $0x1c] sm:$0xf] %v704
    %737 = vst [vmem:[#allocation2 + $0x20] sm:$0xf] %v705
    %738 = vst [vmem:[#allocation2 + $0x24] sm:$0xf] %v706
    %739 = vst [vmem:[#allocation2 + $0x28] sm:$0xf] %v707
    %740 = vst [vmem:[#allocation2 + $0x2c] sm:$0xf] %v708
    %741 = vst [vmem:[#allocation2 + $0x30] sm:$0xf] %v709
    %742 = vst [vmem:[#allocation2 + $0x34] sm:$0xf] %v710
    %743 = vst [vmem:[#allocation2 + $0x38] sm:$0xf] %v711
    %744 = vst [vmem:[#allocation2 + $0x3c] sm:$0xf] %v712
    // Predicated region
    $region14: #{tpu_custom_call.1} parent=1 // pred_check
      _
    $region15: #{tpu_custom_call.1} parent=1 // pred_check_branch
      %746 = sbr.rel (0) target = $region17
    $region16: #{tpu_custom_call.1} parent=1 // pred_region
      %s748 = ssub.s32 1024, 1024
      %749 = vsyncadd [#allocation3], %s748
      %s750 = sshll.u32 [#allocation2], 4
      %s751 = int_to_ptr.vmem [resolvable:$true] %s750
      %756 = dma.vmem_to_hbm [thread:$0]  %s751, 1024, %s3, [#allocation3], 64, 64, 4
    $region17: #{tpu_custom_call.1} parent=1 // pred_fallthru
      _
    // Predicated region
    $region18: #{tpu_custom_call.1} parent=1 // pred_check
      _
    $region19: #{tpu_custom_call.1} parent=1 // pred_check_branch
      %758 = sbr.rel (0) target = $region21
    $region20: #{tpu_custom_call.1} parent=1 // pred_region
      %759 = dma.done [#allocation3], 1024
    $region21: #{tpu_custom_call.1} parent=1 // pred_fallthru
      _
    %760 = vsyncpa [#allocation3], 1

</llo_original>
